<compile_context>
chip_gen: v7x
topology: tpu7x:2x2x1
jax: 0.10.0
libtpu: 0.0.40
codegen_flags: <defaults>
</compile_context>

<pallas_src>
import jax
import jax.numpy as jnp
from jax.experimental import pallas as pl
from jax.experimental.pallas import tpu as pltpu

C_IN, C_MID, C_OUT = 3, 127, 127
KH = KW = 3
K_RAW = KH * KW * C_IN        # 27
K_PAD = 32                    # padded contraction dim
C_PAD = 128                   # padded channel dim (MXU/lane friendly)
TP_MAX = 2048                 # max tile along P (multiple of 128)
TP_MIN = 128                  # lane width


def _round_up(x, m):
    return (x + m - 1) // m * m


def _choose_tp(n, p):
    """Pick the P tile: big (amortize grid overhead) but with >=~4 grid steps
    so v7x's two TensorCores both get work; multiple of 128 for lane density."""
    if p <= TP_MIN:
        return p                               # single full-dim tile
    want_pt = max(1, -(-4 // n))               # ceil(4 / n) tiles along P
    tp = _round_up(-(-p // want_pt), TP_MIN)   # ceil(p / want_pt) -> mult of 128
    tp = min(tp, TP_MAX, (p // TP_MIN) * TP_MIN)
    return max(tp, TP_MIN)


def block_kernel(pt_ref, wt_ref, b_ref, o_ref):
    # pt_ref: (K_PAD, TP)   bf16  im2col patches, channels-first (taps x points)
    # wt_ref: (C_PAD, K_PAD) bf16 folded weight (W1@W2)^T, zero-padded
    # b_ref : (C_PAD, 1)    f32   folded bias (b1@W2 + b2), zero-padded
    # o_ref : (C_OUT, TP)   bf16
    acc = jnp.dot(wt_ref[...], pt_ref[...],
                  preferred_element_type=jnp.float32)        # (C_PAD, TP) f32
    acc = acc + b_ref[...]                                   # f32 bias add
    o_ref[...] = acc[:C_OUT, :].astype(o_ref.dtype)


def block_forward(x_nchw, w1_oihw, b1, w2_oihw, b2):
    """Equivalent of Block.forward (vertical_deploy == False). Returns bf16
    (N, 127, Ho, Wo); append .astype(jnp.float32) if f32 is required downstream."""
    N, C, H, W = x_nchw.shape
    assert C == C_IN
    Ho, Wo = H - KH + 1, W - KW + 1
    P = Ho * Wo

    # --- fold conv1 (3x3) and conv2 (1x1): exact in f32, single bf16 weight ---
    w1_mat = jnp.transpose(w1_oihw, (2, 3, 1, 0)).reshape(K_RAW, C_MID)        # (27,127) [k, mid]
    w2_mat = jnp.transpose(w2_oihw[:, :, 0, 0], (1, 0))                        # (127,127) [mid, out]
    w_fold = jnp.dot(w1_mat.astype(jnp.float32), w2_mat.astype(jnp.float32))   # (27,127) [k, out]
    b_fold = jnp.dot(b1.astype(jnp.float32), w2_mat.astype(jnp.float32)) + b2  # (127,)

    wt = jnp.pad(w_fold.T, ((0, C_PAD - C_OUT), (0, K_PAD - K_RAW)))           # (128,32)
    wt = wt.astype(jnp.bfloat16)
    b_col = jnp.pad(b_fold, (0, C_PAD - C_OUT)).reshape(C_PAD, 1)              # (128,1) f32
    b_col = b_col.astype(jnp.float32)

    # --- glue: channels-first im2col straight from NCHW (tap order dy,dx,cin
    #     matches w1_mat); pad K 27 -> 32 with zeros; bf16. ---
    x_bf = x_nchw.astype(jnp.bfloat16)
    taps = [x_bf[:, :, dy:dy + Ho, dx:dx + Wo]
            for dy in range(KH) for dx in range(KW)]                           # 9 x (N,3,Ho,Wo)
    taps.append(jnp.zeros((N, K_PAD - K_RAW, Ho, Wo), jnp.bfloat16))
    patches_t = jnp.concatenate(taps, axis=1).reshape(N, K_PAD, P)             # (N,32,P)

    TP = _choose_tp(N, P)
    n_pt = pl.cdiv(P, TP)

    flops = 2 * N * n_pt * TP * K_PAD * C_PAD
    bytes_accessed = (patches_t.size * 2 + N * C_OUT * P * 2
                      + wt.size * 2 + b_col.size * 4)

    # --- Pallas kernel: per-(image, P-tile) folded-conv matmul ---
    out = pl.pallas_call(
        block_kernel,
        out_shape=jax.ShapeDtypeStruct((N, C_OUT, P), jnp.bfloat16),
        grid_spec=pltpu.PrefetchScalarGridSpec(
            num_scalar_prefetch=0,
            grid=(N, n_pt),
            in_specs=[
                pl.BlockSpec((None, K_PAD, TP), lambda n, p: (n, 0, p)),
                pl.BlockSpec((C_PAD, K_PAD), lambda n, p: (0, 0)),   # resident
                pl.BlockSpec((C_PAD, 1), lambda n, p: (0, 0)),       # resident
            ],
            out_specs=pl.BlockSpec((None, C_OUT, TP), lambda n, p: (n, 0, p)),
        ),
        compiler_params=pltpu.CompilerParams(
            dimension_semantics=("parallel", "parallel")),
        cost_estimate=pl.CostEstimate(
            flops=flops, transcendentals=0, bytes_accessed=bytes_accessed),
    )(patches_t, wt, b_col)

    # Already channels-first and un-padded: reshape is a free view.
    return out.reshape(N, C_OUT, Ho, Wo)


block_forward = jax.jit(block_forward)


def reference_forward(x, w1, b1, w2, b2):
    y = jax.lax.conv_general_dilated(
        x, w1, window_strides=(1, 1), padding='VALID',
        dimension_numbers=('NCHW', 'OIHW', 'NCHW')) + b1.reshape(1, -1, 1, 1)
    y = jax.lax.conv_general_dilated(
        y, w2, window_strides=(1, 1), padding='VALID',
        dimension_numbers=('NCHW', 'OIHW', 'NCHW')) + b2.reshape(1, -1, 1, 1)
    return y


if __name__ == "__main__":
    key = jax.random.PRNGKey(0)
    k1, k2, k3, k4, k5 = jax.random.split(key, 5)

    # Deterministic synthetic parameters (shapes from Block.__init__).
    w1 = jax.random.normal(k1, (C_MID, C_IN, KH, KW), jnp.float32) * 0.1   # Conv2d(3,127,3)
    b1 = jax.random.normal(k2, (C_MID,), jnp.float32) * 0.1
    w2 = jax.random.normal(k3, (C_OUT, C_MID, 1, 1), jnp.float32) * 0.1    # Conv2d(127,127,1)
    b2 = jax.random.normal(k4, (C_OUT,), jnp.float32) * 0.1

    # Small NCHW input consistent with in_channels=3.
    x = jax.random.normal(k5, (2, 3, 16, 16), jnp.float32)

    y = jax.block_until_ready(block_forward(x, w1, b1, w2, b2))
    y_ref = jax.block_until_ready(reference_forward(x, w1, b1, w2, b2))

    assert y.shape == (2, 127, 14, 14), y.shape
    y_f32 = y.astype(jnp.float32)
    max_err = float(jnp.max(jnp.abs(y_f32 - y_ref)))
    assert jnp.allclose(y_f32, y_ref, atol=3e-2, rtol=3e-2), max_err

    print("KERNEL_OK")
</pallas_src>

<mosaic_0001>
module attributes {stable_mosaic.version = 11 : i64} {
  func.func @block_kernel(%arg0: i32, %arg1: i32, %arg2: memref<1x32x128xbf16, #tpu.memory_space<vmem>>, %arg3: memref<128x32xbf16, #tpu.memory_space<vmem>>, %arg4: memref<128x1xf32, #tpu.memory_space<vmem>>, %arg5: memref<1x127x128xbf16, #tpu.memory_space<vmem>>) attributes {dimension_semantics = [#tpu.dimension_semantics<parallel>, #tpu.dimension_semantics<parallel>], iteration_bounds = array<i64: 2, 2>, scalar_prefetch = 0 : i64, scratch_operands = 0 : i64, tpu.core_type = #tpu.core_type<tc>, window_params = [{transform_indices = @transform_0, window_bounds = array<i64: 1, 32, 128>}, {pipeline_mode = #tpu.pipeline_mode<synchronous>, transform_indices = @transform_1, window_bounds = array<i64: 128, 32>}, {pipeline_mode = #tpu.pipeline_mode<synchronous>, transform_indices = @transform_2, window_bounds = array<i64: 128, 1>}, {transform_indices = @transform_3, window_bounds = array<i64: 1, 127, 128>}]} {
    %c0 = arith.constant 0 : index
    %c0_0 = arith.constant 0 : index
    %0 = vector.load %arg3[%c0, %c0_0] : memref<128x32xbf16, #tpu.memory_space<vmem>>, vector<128x32xbf16>
    %c0_1 = arith.constant 0 : index
    %c0_2 = arith.constant 0 : index
    %c0_3 = arith.constant 0 : index
    %1 = vector.load %arg2[%c0_1, %c0_2, %c0_3] : memref<1x32x128xbf16, #tpu.memory_space<vmem>>, vector<1x32x128xbf16>
    %2 = vector.shape_cast %1 : vector<1x32x128xbf16> to vector<32x128xbf16>
    %cst = arith.constant dense<0.000000e+00> : vector<128x128xf32>
    %3 = tpu.matmul %0, %2, %cst {dimension_numbers = #tpu.dot_dimension_numbers<[1], [0], [0], [1], [0, 0, 1, 1], [], []>} : vector<128x32xbf16>, vector<32x128xbf16>, vector<128x128xf32> -> vector<128x128xf32>
    %c0_4 = arith.constant 0 : index
    %c0_5 = arith.constant 0 : index
    %4 = vector.load %arg4[%c0_4, %c0_5] : memref<128x1xf32, #tpu.memory_space<vmem>>, vector<128x1xf32>
    %5 = vector.broadcast %4 : vector<128x1xf32> to vector<128x128xf32>
    %6 = arith.addf %3, %5 : vector<128x128xf32>
    %7 = vector.extract_strided_slice %6 {offsets = [0, 0], sizes = [127, 128], strides = [1, 1]} : vector<128x128xf32> to vector<127x128xf32>
    %8 = arith.truncf %7 : vector<127x128xf32> to vector<127x128xbf16>
    %c0_6 = arith.constant 0 : index
    %c0_7 = arith.constant 0 : index
    %c0_8 = arith.constant 0 : index
    %9 = vector.load %arg5[%c0_6, %c0_7, %c0_8] : memref<1x127x128xbf16, #tpu.memory_space<vmem>>, vector<1x127x128xbf16>
    %10 = vector.shape_cast %9 : vector<1x127x128xbf16> to vector<127x128xbf16>
    %11 = vector.shape_cast %8 : vector<127x128xbf16> to vector<1x127x128xbf16>
    tpu.vector_store %arg5[%c0_6, %c0_7, %c0_8], %11 {strides = array<i32>} : memref<1x127x128xbf16, #tpu.memory_space<vmem>>, vector<1x127x128xbf16>,
    return
  }
  func.func @transform_0(%arg0: i32, %arg1: i32) -> (i32, i32, i32) {
    %c0_i32 = arith.constant 0 : i32
    %c0_i32_0 = arith.constant 0 : i32
    return %arg0, %c0_i32, %arg1 : i32, i32, i32
  }
  func.func @transform_1(%arg0: i32, %arg1: i32) -> (i32, i32) {
    %c0_i32 = arith.constant 0 : i32
    %c0_i32_0 = arith.constant 0 : i32
    %c0_i32_1 = arith.constant 0 : i32
    return %c0_i32, %c0_i32_0 : i32, i32
  }
  func.func @transform_2(%arg0: i32, %arg1: i32) -> (i32, i32) {
    %c0_i32 = arith.constant 0 : i32
    %c0_i32_0 = arith.constant 0 : i32
    %c0_i32_1 = arith.constant 0 : i32
    return %c0_i32, %c0_i32_0 : i32, i32
  }
  func.func @transform_3(%arg0: i32, %arg1: i32) -> (i32, i32, i32) {
    %c0_i32 = arith.constant 0 : i32
    %c0_i32_0 = arith.constant 0 : i32
    return %arg0, %c0_i32, %arg1 : i32, i32, i32
  }
}

</mosaic_0001>

<llo_original>
// kernel: block_forward.1
$region0: #{block_forward.1}
  #allocation0 [shape = 'u32[]', space=smem, size = 0x4, offset = 0x4, fixed_abs, tag = 'smem constant byte address 0x4 - core index']
  #allocation1 [shape = 'u32[144,128]{1,0:T(1,128)}', space=vmem, size = 0x12000, scoped, tag = 'internal scratch']
  %s0 = inlined_call_operand.vmem [shape: bf16[2,32,196], index: 0, kind: input, shape index: {}]
  %s1 = inlined_call_operand.vmem [shape: bf16[128,32], index: 1, kind: input, shape index: {}]
  %s2 = inlined_call_operand.vmem [shape: f32[128,1], index: 2, kind: input, shape index: {}]
  %s3 = inlined_call_operand.vmem [shape: bf16[2,127,196], index: 3, kind: output, shape index: {}]
  %s4 = sld [smem:[#allocation0]]
  $region123: #{block_forward.1} parent=0
    _
  %s6 = ssub.s32 1, %s4
  %s7 = scalar_select 0, %s6, %s4
  $region1: #{block_forward.1} parent=0
    #allocation2 [shape = 'u8[16384]{0}', space=vmem, size = 0x4000, scoped, tag = 'input window, operand 0']
    #allocation3 [shape = 'u8[65536]{0}', space=vmem, size = 0x10000, scoped, tag = 'output window, operand 0']
    loop: start=0, step=1, limit=6
    $region2: #{block_forward.1} parent=1 // loop_pre_header
      _
    $region3: #{block_forward.1} parent=1 // loop_header
      %s9 = sphi 0, %s13
      %p10 = scmp.ge.s32.totalorder %s9, 6
      %s16 = sphi 0, %s28
      %s17 = sphi 0, %s24
      %s18 = sphi 0, %s16
      %s19 = sphi 0, %s17
      %s20 = sphi 0, %s18
      %s21 = sphi 0, %s19
      %s33 = sphi 0, %s35
      %s36 = sphi 0, %s33
      %s37 = sphi 0, %s36
      %s53 = sphi 0, %s37
      %s57 = sphi 0, %s57
      %s59 = sphi 0, %s57
      %s60 = sphi 0, %s59
      %s74 = sphi 0, %s60
      %s78 = sphi 0, %s78
      %s80 = sphi 0, %s78
      %s81 = sphi 0, %s80
      %s95 = sphi 0, %s81
      %s103 = sphi 0, %s105
      %s106 = sphi 0, %s103
      %s107 = sphi 0, %s106
      %s123 = sphi 0, %s107
    $region4: #{block_forward.1} parent=1 // loop_header_branch
      %12 = sbr.rel (%p10) target = $region8
    $region5: #{block_forward.1} parent=1 // loop_body
      %s14 = ssub.s32 %s9, 1
      %s15 = ssub.s32 %s9, 2
      %s22 = sadd.s32 1, %s17
      %p23 = scmp.ge.s32.totalorder %s22, 2
      %s24 = scalar_select %p23, 0, %s22
      %s25 = sadd.s32 1, %s16
      %s26 = scalar_select %p23, %s25, %s16
      %p27 = scmp.ge.s32.totalorder %s26, 2
      %s28 = scalar_select %p27, 0, %s26
      %s29 = ssub.s32 %s16, %s28
      %s30 = ssub.s32 %s17, %s24
      %s31 = sor.u32 %s29, %s30
      %p32 = scmp.eq.s32.totalorder %s31, 0
      %s34 = sadd.s32 %s33, 1
      %s35 = scalar_select %p32, %s33, %s34
      %p38 = pneg %p32
      %p39 = scmp.eq.s32.totalorder %s9, 3
      %p40 = por %p38, %p39
      %p41 = scmp.ne.s32.totalorder %s33, %s36
      %p42 = scmp.eq.s32.totalorder %s9, 0
      %p43 = por %p41, %p42
      %p44 = scmp.ne.s32.totalorder %s33, %s36
      %p45 = scmp.eq.s32.totalorder %s14, 3
      %p46 = por %p44, %p45
      %p47 = scmp.ne.s32.totalorder %s36, %s37
      %p48 = scmp.eq.s32.totalorder %s14, 0
      %p49 = por %p47, %p48
      %p50 = scmp.ne.s32.totalorder %s36, %s37
      %p51 = scmp.eq.s32.totalorder %s15, 3
      %p52 = por %p50, %p51
      %p54 = scmp.ne.s32.totalorder %s37, %s53
      %p55 = scmp.eq.s32.totalorder %s15, 0
      %p56 = por %p54, %p55
      %s58 = sadd.s32 %s57, 1
      %p61 = scmp.eq.s32.totalorder %s9, 3
      %p62 = scmp.ne.s32.totalorder %s57, %s59
      %p63 = scmp.eq.s32.totalorder %s9, 0
      %p64 = por %p62, %p63
      %p65 = scmp.ne.s32.totalorder %s57, %s59
      %p66 = scmp.eq.s32.totalorder %s14, 3
      %p67 = por %p65, %p66
      %p68 = scmp.ne.s32.totalorder %s59, %s60
      %p69 = scmp.eq.s32.totalorder %s14, 0
      %p70 = por %p68, %p69
      %p71 = scmp.ne.s32.totalorder %s59, %s60
      %p72 = scmp.eq.s32.totalorder %s15, 3
      %p73 = por %p71, %p72
      %p75 = scmp.ne.s32.totalorder %s60, %s74
      %p76 = scmp.eq.s32.totalorder %s15, 0
      %p77 = por %p75, %p76
      %s79 = sadd.s32 %s78, 1
      %p82 = scmp.eq.s32.totalorder %s9, 3
      %p83 = scmp.ne.s32.totalorder %s78, %s80
      %p84 = scmp.eq.s32.totalorder %s9, 0
      %p85 = por %p83, %p84
      %p86 = scmp.ne.s32.totalorder %s78, %s80
      %p87 = scmp.eq.s32.totalorder %s14, 3
      %p88 = por %p86, %p87
      %p89 = scmp.ne.s32.totalorder %s80, %s81
      %p90 = scmp.eq.s32.totalorder %s14, 0
      %p91 = por %p89, %p90
      %p92 = scmp.ne.s32.totalorder %s80, %s81
      %p93 = scmp.eq.s32.totalorder %s15, 3
      %p94 = por %p92, %p93
      %p96 = scmp.ne.s32.totalorder %s81, %s95
      %p97 = scmp.eq.s32.totalorder %s15, 0
      %p98 = por %p96, %p97
      %s99 = ssub.s32 %s16, %s28
      %s100 = ssub.s32 %s17, %s24
      %s101 = sor.u32 %s99, %s100
      %p102 = scmp.eq.s32.totalorder %s101, 0
      %s104 = sadd.s32 %s103, 1
      %s105 = scalar_select %p102, %s103, %s104
      %p108 = pneg %p102
      %p109 = scmp.eq.s32.totalorder %s9, 3
      %p110 = por %p108, %p109
      %p111 = scmp.ne.s32.totalorder %s103, %s106
      %p112 = scmp.eq.s32.totalorder %s9, 0
      %p113 = por %p111, %p112
      %p114 = scmp.ne.s32.totalorder %s103, %s106
      %p115 = scmp.eq.s32.totalorder %s14, 3
      %p116 = por %p114, %p115
      %p117 = scmp.ne.s32.totalorder %s106, %s107
      %p118 = scmp.eq.s32.totalorder %s14, 0
      %p119 = por %p117, %p118
      %p120 = scmp.ne.s32.totalorder %s106, %s107
      %p121 = scmp.eq.s32.totalorder %s15, 3
      %p122 = por %p120, %p121
      %p124 = scmp.ne.s32.totalorder %s107, %s123
      %p125 = scmp.eq.s32.totalorder %s15, 0
      %p126 = por %p124, %p125
      %p127 = scmp.le.s32.totalorder 1, %s9
      %p128 = scmp.lt.s32.totalorder %s9, 5
      %p129 = pnand %p127, %p128
      %p130 = pneg %p129
      // Predicated region
      $region9: #{block_forward.1} parent=5 // pred_check
        _
      $region10: #{block_forward.1} parent=5 // pred_check_branch
        %132 = sbr.rel (%p129) target = $region12
      $region11: #{block_forward.1} parent=5 // pred_region
        %s133 = ssub.s32 %s9, 1
        // Predicated region
        $region13: #{block_forward.1} parent=11 // pred_check
          %p134 = pneg %p70
        $region14: #{block_forward.1} parent=11 // pred_check_branch
          %136 = sbr.rel (%p134) target = $region16
        $region15: #{block_forward.1} parent=11 // pred_region
          _
        $region16: #{block_forward.1} parent=11 // pred_fallthru
          _
        // Predicated region
        $region17: #{block_forward.1} parent=11 // pred_check
          %p137 = pneg %p91
        $region18: #{block_forward.1} parent=11 // pred_check_branch
          %139 = sbr.rel (%p137) target = $region20
        $region19: #{block_forward.1} parent=11 // pred_region
          _
        $region20: #{block_forward.1} parent=11 // pred_fallthru
          _
      $region12: #{block_forward.1} parent=5 // pred_fallthru
        _
      %p140 = scmp.lt.s32.totalorder %s9, 4
      // Predicated region
      $region21: #{block_forward.1} parent=5 // pred_check
        %p141 = pneg %p140
      $region22: #{block_forward.1} parent=5 // pred_check_branch
        %143 = sbr.rel (%p141) target = $region24
      $region23: #{block_forward.1} parent=5 // pred_region
        // Predicated region
        $region25: #{block_forward.1} parent=23 // pred_check
          %p144 = pneg %p43
        $region26: #{block_forward.1} parent=23 // pred_check_branch
          %146 = sbr.rel (%p144) target = $region28
        $region27: #{block_forward.1} parent=23 // pred_region
          %s147 = sand.u32 %s33, 1
          %s148 = sand.u32 %s33, 1
          %s149 = smul.addr %s148, 16
          %s150 = scalar_lea.vmem [#allocation2], %s149
          %s151 = smul.addr %s16, 8
          %s152 = sadd.s32 %s17, %s151
          %s153 = smul.addr %s152, 4
          %s154 = scalar_lea.vmem %s0, %s153
          // Predicated region
          $region29: #{block_forward.1} parent=27 // pred_check
            _
          $region30: #{block_forward.1} parent=27 // pred_check_branch
            %156 = sbr.rel (0) target = $region32
          $region31: #{block_forward.1} parent=27 // pred_region
            // Predicated region
            $region33: #{block_forward.1} parent=31 // pred_check
              _
            $region34: #{block_forward.1} parent=31 // pred_check_branch
              %158 = sbr.rel target = $region36
            $region35: #{block_forward.1} parent=31 // pred_region
              // Predicated region
              $region48: #{block_forward.1} parent=35 // pred_check
                _
              $region49: #{block_forward.1} parent=35 // pred_check_branch
                %179 = sbr.rel (0) target = $region51
              $region50: #{block_forward.1} parent=35 // pred_region
                loop: start=0, step=1, limit=1
                $region52: #{block_forward.1} parent=50 // loop_pre_header
                  _
                $region53: #{block_forward.1} parent=50 // loop_header
                  %s181 = sphi 0, %s185
                  %p182 = scmp.ge.s32.totalorder %s181, 1
                  %s186 = sphi %s154, %s154
                  %s187 = sphi %s150, %s150
                $region54: #{block_forward.1} parent=50 // loop_header_branch
                  %184 = sbr.rel (%p182) target = $region58
                $region55: #{block_forward.1} parent=50 // loop_body
                  _
                $region56: #{block_forward.1} parent=50 // loop_footer
                  %s185 = sadd.s32 1, %s181
                $region57: #{block_forward.1} parent=50 // loop_footer_branch
                  %180 = sbr.rel target = $region53
                $region58: #{block_forward.1} parent=50 // loop_exit
                  _
                loop: start=0, step=1, limit=1
                $region59: #{block_forward.1} parent=50 // loop_pre_header
                  _
                $region60: #{block_forward.1} parent=50 // loop_header
                  %s190 = sphi 0, %s194
                  %p191 = scmp.ge.s32.totalorder %s190, 1
                  %s195 = sphi %s154, %s154
                  %s196 = sphi %s150, %s150
                $region61: #{block_forward.1} parent=50 // loop_header_branch
                  %193 = sbr.rel (%p191) target = $region65
                $region62: #{block_forward.1} parent=50 // loop_body
                  %v197 = vld [vmem:[%s195] sm:$0xf]
                  %198 = vst [vmem:[%s196] sm:$0xf] %v197
                  %v199 = vld [vmem:[%s195 + $0x8] sm:$0xf]
                  %200 = vst [vmem:[%s196 + $0x4] sm:$0xf] %v199
                  %v201 = vld [vmem:[%s195 + $0x10] sm:$0xf]
                  %202 = vst [vmem:[%s196 + $0x8] sm:$0xf] %v201
                  %v203 = vld [vmem:[%s195 + $0x18] sm:$0xf]
                  %204 = vst [vmem:[%s196 + $0xc] sm:$0xf] %v203
                $region63: #{block_forward.1} parent=50 // loop_footer
                  %s194 = sadd.s32 1, %s190
                $region64: #{block_forward.1} parent=50 // loop_footer_branch
                  %189 = sbr.rel target = $region60
                $region65: #{block_forward.1} parent=50 // loop_exit
                  _
              $region51: #{block_forward.1} parent=35 // pred_fallthru
                _
            $region36: #{block_forward.1} parent=31 // pred_fallthru
              _
            // Predicated region
            $region37: #{block_forward.1} parent=31 // pred_check
              _
            $region38: #{block_forward.1} parent=31 // pred_check_branch
              %160 = sbr.rel (0) target = $region40
            $region39: #{block_forward.1} parent=31 // pred_region
              loop: start=0, step=1, limit=1
              $region41: #{block_forward.1} parent=39 // loop_pre_header
                _
              $region42: #{block_forward.1} parent=39 // loop_header
                %s163 = sphi 0, %s167
                %p164 = scmp.ge.s32.totalorder %s163, 1
                %s168 = sphi %s154, %s154
                %s169 = sphi %s150, %s150
              $region43: #{block_forward.1} parent=39 // loop_header_branch
                %166 = sbr.rel (%p164) target = $region47
              $region44: #{block_forward.1} parent=39 // loop_body
                %v170 = vld [vmem:[%s168] sm:$0xf]
                %171 = vst [vmem:[%s169] sm:$0xf] %v170
                %v172 = vld [vmem:[%s168 + $0x8] sm:$0xf]
                %173 = vst [vmem:[%s169 + $0x4] sm:$0xf] %v172
                %v174 = vld [vmem:[%s168 + $0x10] sm:$0xf]
                %175 = vst [vmem:[%s169 + $0x8] sm:$0xf] %v174
                %v176 = vld [vmem:[%s168 + $0x18] sm:$0xf]
                %177 = vst [vmem:[%s169 + $0xc] sm:$0xf] %v176
              $region45: #{block_forward.1} parent=39 // loop_footer
                %s167 = sadd.s32 1, %s163
              $region46: #{block_forward.1} parent=39 // loop_footer_branch
                %162 = sbr.rel target = $region42
              $region47: #{block_forward.1} parent=39 // loop_exit
                _
            $region40: #{block_forward.1} parent=31 // pred_fallthru
              _
          $region32: #{block_forward.1} parent=27 // pred_fallthru
            _
          %205 = vnop
        $region28: #{block_forward.1} parent=23 // pred_fallthru
          _
      $region24: #{block_forward.1} parent=5 // pred_fallthru
        _
      %p206 = scmp.le.s32.totalorder 1, %s9
      %p207 = scmp.lt.s32.totalorder %s9, 5
      %p208 = pnand %p206, %p207
      %p209 = pneg %p208
      // Predicated region
      $region66: #{block_forward.1} parent=5 // pred_check
        _
      $region67: #{block_forward.1} parent=5 // pred_check_branch
        %211 = sbr.rel (%p208) target = $region69
      $region68: #{block_forward.1} parent=5 // pred_region
        %s212 = ssub.s32 %s9, 1
        %s213 = sand.u32 %s36, 1
        %s214 = sand.u32 %s36, 1
        %s215 = smul.addr %s214, 16
        %s216 = scalar_lea.vmem [#allocation2], %s215
        // Predicated region
        $region70: #{block_forward.1} parent=68 // pred_check
          %p217 = pneg %p49
        $region71: #{block_forward.1} parent=68 // pred_check_branch
          %219 = sbr.rel (%p217) target = $region73
        $region72: #{block_forward.1} parent=68 // pred_region
          _
        $region73: #{block_forward.1} parent=68 // pred_fallthru
          _
        %s220 = sand.u32 %s36, 1
        %s221 = sand.u32 %s36, 1
        %s222 = smul.addr %s221, 16
        %s223 = scalar_lea.vmem [#allocation2], %s222
        %p224 = pneg %p49
        %p225 = pneg %p46
        %p226 = pneg %p70
        %p227 = pneg %p67
        %p228 = pneg %p91
        %p229 = pneg %p88
        %p230 = pneg %p119
        %p231 = pneg %p116
        %s232 = sand.u32 %s106, 1
        %s233 = sand.u32 %s106, 1
        %s234 = smul.addr %s233, 64
        %s235 = scalar_lea.vmem [#allocation3], %s234
        %v237 = vld [vmem:[%s1] sm:$0xf]
        %v238 = vld [vmem:[%s1 + $0x4] sm:$0xf]
        %v239 = vld [vmem:[%s1 + $0x8] sm:$0xf]
        %v240 = vld [vmem:[%s1 + $0xc] sm:$0xf]
        %v241 = vld [vmem:[%s1 + $0x10] sm:$0xf]
        %v242 = vld [vmem:[%s1 + $0x14] sm:$0xf]
        %v243 = vld [vmem:[%s1 + $0x18] sm:$0xf]
        %v244 = vld [vmem:[%s1 + $0x1c] sm:$0xf]
        %v245 = vld [vmem:[%s1 + $0x20] sm:$0xf]
        %v246 = vld [vmem:[%s1 + $0x24] sm:$0xf]
        %v247 = vld [vmem:[%s1 + $0x28] sm:$0xf]
        %v248 = vld [vmem:[%s1 + $0x2c] sm:$0xf]
        %v249 = vld [vmem:[%s1 + $0x30] sm:$0xf]
        %v250 = vld [vmem:[%s1 + $0x34] sm:$0xf]
        %v251 = vld [vmem:[%s1 + $0x38] sm:$0xf]
        %v252 = vld [vmem:[%s1 + $0x3c] sm:$0xf]
        %v253 = vld [vmem:[%s216] sm:$0xf]
        %v254 = vld [vmem:[%s216 + $0x4] sm:$0xf]
        %v255 = vld [vmem:[%s216 + $0x8] sm:$0xf]
        %v256 = vld [vmem:[%s216 + $0xc] sm:$0xf]
        %v257 = vld [vmem:[%s2] sm:$0xff]
        %v258 = vld [vmem:[%s2 + $0x8] sm:$0xff]
        %v259 = vld [vmem:[%s2 + $0x10] sm:$0xff]
        %v260 = vld [vmem:[%s2 + $0x18] sm:$0xff]
        %v261 = vld [vmem:[%s2 + $0x20] sm:$0xff]
        %v262 = vld [vmem:[%s2 + $0x28] sm:$0xff]
        %v263 = vld [vmem:[%s2 + $0x30] sm:$0xff]
        %v264 = vld [vmem:[%s2 + $0x38] sm:$0xff]
        %v265 = vld [vmem:[%s2 + $0x40] sm:$0xff]
        %v266 = vld [vmem:[%s2 + $0x48] sm:$0xff]
        %v267 = vld [vmem:[%s2 + $0x50] sm:$0xff]
        %v268 = vld [vmem:[%s2 + $0x58] sm:$0xff]
        %v269 = vld [vmem:[%s2 + $0x60] sm:$0xff]
        %v270 = vld [vmem:[%s2 + $0x68] sm:$0xff]
        %v271 = vld [vmem:[%s2 + $0x70] sm:$0xff]
        %v272 = vld [vmem:[%s2 + $0x78] sm:$0xff]
        %274 = vset.pattern.permute.xlu0 0
        %275 = vperm.xlu0 %274, %v257
        %v276 = vpop.permute.xlu0 %275
        %279 = vset.pattern.permute.xlu0 0
        %280 = vperm.xlu0 %279, %v258
        %v281 = vpop.permute.xlu0 %280
        %284 = vset.pattern.permute.xlu0 0
        %285 = vperm.xlu0 %284, %v259
        %v286 = vpop.permute.xlu0 %285
        %289 = vset.pattern.permute.xlu0 0
        %290 = vperm.xlu0 %289, %v260
        %v291 = vpop.permute.xlu0 %290
        %294 = vset.pattern.permute.xlu0 0
        %295 = vperm.xlu0 %294, %v261
        %v296 = vpop.permute.xlu0 %295
        %299 = vset.pattern.permute.xlu0 0
        %300 = vperm.xlu0 %299, %v262
        %v301 = vpop.permute.xlu0 %300
        %304 = vset.pattern.permute.xlu0 0
        %305 = vperm.xlu0 %304, %v263
        %v306 = vpop.permute.xlu0 %305
        %309 = vset.pattern.permute.xlu0 0
        %310 = vperm.xlu0 %309, %v264
        %v311 = vpop.permute.xlu0 %310
        %314 = vset.pattern.permute.xlu0 0
        %315 = vperm.xlu0 %314, %v265
        %v316 = vpop.permute.xlu0 %315
        %319 = vset.pattern.permute.xlu0 0
        %320 = vperm.xlu0 %319, %v266
        %v321 = vpop.permute.xlu0 %320
        %324 = vset.pattern.permute.xlu0 0
        %325 = vperm.xlu0 %324, %v267
        %v326 = vpop.permute.xlu0 %325
        %329 = vset.pattern.permute.xlu0 0
        %330 = vperm.xlu0 %329, %v268
        %v331 = vpop.permute.xlu0 %330
        %334 = vset.pattern.permute.xlu0 0
        %335 = vperm.xlu0 %334, %v269
        %v336 = vpop.permute.xlu0 %335
        %339 = vset.pattern.permute.xlu0 0
        %340 = vperm.xlu0 %339, %v270
        %v341 = vpop.permute.xlu0 %340
        %344 = vset.pattern.permute.xlu0 0
        %345 = vperm.xlu0 %344, %v271
        %v346 = vpop.permute.xlu0 %345
        %349 = vset.pattern.permute.xlu0 0
        %350 = vperm.xlu0 %349, %v272
        %v351 = vpop.permute.xlu0 %350
        %v369 = vunpack.c.l.b16 %v237
        %v370 = vunpack.c.l.b16 %v238
        %v371 = vunpack.c.l.b16 %v239
        %v372 = vunpack.c.l.b16 %v240
        %v373 = vunpack.c.l.b16 %v241
        %v374 = vunpack.c.l.b16 %v242
        %v375 = vunpack.c.l.b16 %v243
        %v376 = vunpack.c.l.b16 %v244
        %v377 = vunpack.c.l.b16 %v245
        %v378 = vunpack.c.l.b16 %v246
        %v379 = vunpack.c.l.b16 %v247
        %v380 = vunpack.c.l.b16 %v248
        %v381 = vunpack.c.l.b16 %v249
        %v382 = vunpack.c.l.b16 %v250
        %v383 = vunpack.c.l.b16 %v251
        %v384 = vunpack.c.l.b16 %v252
        %v385 = vpack.c.b16 %v370, %v369
        %v386 = vpack.c.b16 %v372, %v371
        %v387 = vpack.c.b16 %v374, %v373
        %v388 = vpack.c.b16 %v376, %v375
        %v389 = vpack.c.b16 %v378, %v377
        %v390 = vpack.c.b16 %v380, %v379
        %v391 = vpack.c.b16 %v382, %v381
        %v392 = vpack.c.b16 %v384, %v383
        %v397 = vunpack.c.l.b16 %v253
        %v398 = vunpack.c.l.b16 %v254
        %v399 = vunpack.c.l.b16 %v255
        %v400 = vunpack.c.l.b16 %v256
        %v401 = vpack.c.b16 %v398, %v397
        %v402 = vpack.c.b16 %v400, %v399
        %vm405 = vcmask 261120
        %v407 = vsel %vm405, %v385, 0
        %v410 = vsel %vm405, %v386, 0
        %v413 = vsel %vm405, %v387, 0
        %v416 = vsel %vm405, %v388, 0
        %v419 = vsel %vm405, %v389, 0
        %v422 = vsel %vm405, %v390, 0
        %v425 = vsel %vm405, %v391, 0
        %v428 = vsel %vm405, %v392, 0
        %430 = vmatprep.subr.bf16.mxu0 0
        %431 = vmatpush1.bf16.msra.mxu0 %v401
        %432 = vmatprep.subr.bf16.mxu0 0
        %433 = vmatpush1.bf16.msra.mxu0 %v402
        %434 = vmatprep.subr.bf16.mxu0 0
        %435 = vmatpush1.bf16.msra.mxu0 0
        %436 = vmatprep.subr.bf16.mxu0 0
        %437 = vmatpush1.bf16.msra.mxu0 0
        %438 = vmatprep.subr.bf16.mxu0 0
        %439 = vmatpush1.bf16.msra.mxu0 0
        %440 = vmatprep.subr.bf16.mxu0 0
        %441 = vmatpush1.bf16.msra.mxu0 0
        %442 = vmatprep.subr.bf16.mxu0 0
        %443 = vmatpush1.bf16.msra.mxu0 0
        %444 = vmatprep.subr.bf16.mxu0 0
        %445 = vmatpush1.bf16.msra.mxu0 0
        %446 = vmatprep.subr.bf16.mxu0 0
        %447 = vmatpush1.bf16.msra.mxu0 0
        %448 = vmatprep.subr.bf16.mxu0 0
        %449 = vmatpush1.bf16.msra.mxu0 0
        %450 = vmatprep.subr.bf16.mxu0 0
        %451 = vmatpush1.bf16.msra.mxu0 0
        %452 = vmatprep.subr.bf16.mxu0 0
        %453 = vmatpush1.bf16.msra.mxu0 0
        %454 = vmatprep.subr.bf16.mxu0 0
        %455 = vmatpush1.bf16.msra.mxu0 0
        %456 = vmatprep.subr.bf16.mxu0 0
        %457 = vmatpush1.bf16.msra.mxu0 0
        %458 = vmatprep.subr.bf16.mxu0 0
        %459 = vmatpush1.bf16.msra.mxu0 0
        %460 = vmatprep.subr.bf16.mxu0 0
        %461 = vmatpush1.bf16.msra.mxu0 0
        %462 = vmatprep.mubr.bf16.mxu0 0
        %463 = vmatmul.mubr.bf16.gmra.mrb[0].mxu0 %v407
        %v464 = vpop.f32.mrb[0].mxu0
        %v465 = vadd.f32 %v276, %v464
        %v466 = vpop.f32.mrb[0].mxu0
        %v467 = vpop.f32.mrb[0].mxu0
        %v468 = vadd.f32 %v281, %v467
        %v469 = vpop.f32.mrb[0].mxu0
        %470 = vmatprep.mubr.bf16.mxu0 0
        %471 = vmatmul.mubr.bf16.gmra.mrb[0].mxu0 %v410
        %v472 = vpop.f32.mrb[0].mxu0
        %v473 = vadd.f32 %v286, %v472
        %v474 = vpop.f32.mrb[0].mxu0
        %v475 = vpop.f32.mrb[0].mxu0
        %v476 = vadd.f32 %v291, %v475
        %v477 = vpop.f32.mrb[0].mxu0
        %478 = vmatprep.mubr.bf16.mxu0 0
        %479 = vmatmul.mubr.bf16.gmra.mrb[0].mxu0 %v413
        %v480 = vpop.f32.mrb[0].mxu0
        %v481 = vadd.f32 %v296, %v480
        %v482 = vpop.f32.mrb[0].mxu0
        %v483 = vpop.f32.mrb[0].mxu0
        %v484 = vadd.f32 %v301, %v483
        %v485 = vpop.f32.mrb[0].mxu0
        %486 = vmatprep.mubr.bf16.mxu0 0
        %487 = vmatmul.mubr.bf16.gmra.mrb[0].mxu0 %v416
        %v488 = vpop.f32.mrb[0].mxu0
        %v489 = vadd.f32 %v306, %v488
        %v490 = vpop.f32.mrb[0].mxu0
        %v491 = vpop.f32.mrb[0].mxu0
        %v492 = vadd.f32 %v311, %v491
        %v493 = vpop.f32.mrb[0].mxu0
        %494 = vmatprep.mubr.bf16.mxu0 0
        %495 = vmatmul.mubr.bf16.gmra.mrb[0].mxu0 %v419
        %v496 = vpop.f32.mrb[0].mxu0
        %v497 = vadd.f32 %v316, %v496
        %v498 = vpop.f32.mrb[0].mxu0
        %v499 = vpop.f32.mrb[0].mxu0
        %v500 = vadd.f32 %v321, %v499
        %v501 = vpop.f32.mrb[0].mxu0
        %502 = vmatprep.mubr.bf16.mxu0 0
        %503 = vmatmul.mubr.bf16.gmra.mrb[0].mxu0 %v422
        %v504 = vpop.f32.mrb[0].mxu0
        %v505 = vadd.f32 %v326, %v504
        %v506 = vpop.f32.mrb[0].mxu0
        %v507 = vpop.f32.mrb[0].mxu0
        %v508 = vadd.f32 %v331, %v507
        %v509 = vpop.f32.mrb[0].mxu0
        %510 = vmatprep.mubr.bf16.mxu0 0
        %511 = vmatmul.mubr.bf16.gmra.mrb[0].mxu0 %v425
        %v512 = vpop.f32.mrb[0].mxu0
        %v513 = vadd.f32 %v336, %v512
        %v514 = vpop.f32.mrb[0].mxu0
        %v515 = vpop.f32.mrb[0].mxu0
        %v516 = vadd.f32 %v341, %v515
        %v517 = vpop.f32.mrb[0].mxu0
        %518 = vmatprep.mubr.bf16.mxu0 0
        %519 = vmatmul.mubr.bf16.gmra.mrb[0].mxu0 %v428
        %v520 = vpop.f32.mrb[0].mxu0
        %v521 = vadd.f32 %v346, %v520
        %v522 = vpop.f32.mrb[0].mxu0
        %v523 = vpop.f32.mrb[0].mxu0
        %v524 = vadd.f32 %v351, %v523
        %v525 = vpop.f32.mrb[0].mxu0
        %526 = vdwg.mxu0
        %v527 = vpack.c.bf16 %v468, %v465
        %v528 = vpack.c.bf16 %v476, %v473
        %v529 = vpack.c.bf16 %v484, %v481
        %v530 = vpack.c.bf16 %v492, %v489
        %v531 = vpack.c.bf16 %v500, %v497
        %v532 = vpack.c.bf16 %v508, %v505
        %v533 = vpack.c.bf16 %v516, %v513
        %v534 = vpack.c.bf16 %v524, %v521
        %v543 = vunpack.c.l.b16 %v527
        %v544 = vunpack.c.h.b16 %v527
        %v545 = vunpack.c.l.b16 %v528
        %v546 = vunpack.c.h.b16 %v528
        %v547 = vunpack.c.l.b16 %v529
        %v548 = vunpack.c.h.b16 %v529
        %v549 = vunpack.c.l.b16 %v530
        %v550 = vunpack.c.h.b16 %v530
        %v551 = vunpack.c.l.b16 %v531
        %v552 = vunpack.c.h.b16 %v531
        %v553 = vunpack.c.l.b16 %v532
        %v554 = vunpack.c.h.b16 %v532
        %v555 = vunpack.c.l.b16 %v533
        %v556 = vunpack.c.h.b16 %v533
        %v557 = vunpack.c.l.b16 %v534
        %v558 = vunpack.c.h.b16 %v534
        %v559 = vpack.c.b16 %v543, %v543
        %v560 = vpack.c.b16 %v544, %v544
        %v561 = vpack.c.b16 %v545, %v545
        %v562 = vpack.c.b16 %v546, %v546
        %v563 = vpack.c.b16 %v547, %v547
        %v564 = vpack.c.b16 %v548, %v548
        %v565 = vpack.c.b16 %v549, %v549
        %v566 = vpack.c.b16 %v550, %v550
        %v567 = vpack.c.b16 %v551, %v551
        %v568 = vpack.c.b16 %v552, %v552
        %v569 = vpack.c.b16 %v553, %v553
        %v570 = vpack.c.b16 %v554, %v554
        %v571 = vpack.c.b16 %v555, %v555
        %v572 = vpack.c.b16 %v556, %v556
        %v573 = vpack.c.b16 %v557, %v557
        %v574 = vpack.c.b16 %v558, %v558
        %591 = vst [vmem:[%s235] sm:$0xf] %v559
        %592 = vst [vmem:[%s235 + $0x4] sm:$0xf] %v560
        %593 = vst [vmem:[%s235 + $0x8] sm:$0xf] %v561
        %594 = vst [vmem:[%s235 + $0xc] sm:$0xf] %v562
        %595 = vst [vmem:[%s235 + $0x10] sm:$0xf] %v563
        %596 = vst [vmem:[%s235 + $0x14] sm:$0xf] %v564
        %597 = vst [vmem:[%s235 + $0x18] sm:$0xf] %v565
        %598 = vst [vmem:[%s235 + $0x1c] sm:$0xf] %v566
        %599 = vst [vmem:[%s235 + $0x20] sm:$0xf] %v567
        %600 = vst [vmem:[%s235 + $0x24] sm:$0xf] %v568
        %601 = vst [vmem:[%s235 + $0x28] sm:$0xf] %v569
        %602 = vst [vmem:[%s235 + $0x2c] sm:$0xf] %v570
        %603 = vst [vmem:[%s235 + $0x30] sm:$0xf] %v571
        %604 = vst [vmem:[%s235 + $0x34] sm:$0xf] %v572
        %605 = vst [vmem:[%s235 + $0x38] sm:$0xf] %v573
        %vm606 = vcmask 1043456
        %vm607 = vsmask.f32 3328
        %vm608 = vmand %vm606, %vm607
        %v609 = vld [vmem:[%s235 + $0x3c] sm:$0xf]
        %v610 = vsel %vm608, %v574, %v609
        %611 = vst [vmem:[%s235 + $0x3c] sm:$0xf] %v610
        %s612 = sand.u32 %s106, 1
        %s613 = sand.u32 %s106, 1
        %s614 = smul.addr %s613, 64
        %s615 = scalar_lea.vmem [#allocation3], %s614
        // Predicated region
        $region74: #{block_forward.1} parent=68 // pred_check
          %p616 = pneg %p116
        $region75: #{block_forward.1} parent=68 // pred_check_branch
          %618 = sbr.rel (%p616) target = $region77
        $region76: #{block_forward.1} parent=68 // pred_region
          %s619 = smul.addr %s18, 32
          %s620 = sadd.s32 %s19, %s619
          %s621 = smul.addr %s620, 4
          %s622 = scalar_lea.vmem %s3, %s621
          // Predicated region
          $region78: #{block_forward.1} parent=76 // pred_check
            _
          $region79: #{block_forward.1} parent=76 // pred_check_branch
            %624 = sbr.rel (0) target = $region81
          $region80: #{block_forward.1} parent=76 // pred_region
            // Predicated region
            $region82: #{block_forward.1} parent=80 // pred_check
              _
            $region83: #{block_forward.1} parent=80 // pred_check_branch
              %626 = sbr.rel target = $region85
            $region84: #{block_forward.1} parent=80 // pred_region
              // Predicated region
              $region97: #{block_forward.1} parent=84 // pred_check
                _
              $region98: #{block_forward.1} parent=84 // pred_check_branch
                %671 = sbr.rel (0) target = $region100
              $region99: #{block_forward.1} parent=84 // pred_region
                loop: start=0, step=1, limit=1
                $region101: #{block_forward.1} parent=99 // loop_pre_header
                  _
                $region102: #{block_forward.1} parent=99 // loop_header
                  %s673 = sphi 0, %s677
                  %p674 = scmp.ge.s32.totalorder %s673, 1
                  %s678 = sphi %s615, %s615
                  %s679 = sphi %s622, %s622
                $region103: #{block_forward.1} parent=99 // loop_header_branch
                  %676 = sbr.rel (%p674) target = $region107
                $region104: #{block_forward.1} parent=99 // loop_body
                  _
                $region105: #{block_forward.1} parent=99 // loop_footer
                  %s677 = sadd.s32 1, %s673
                $region106: #{block_forward.1} parent=99 // loop_footer_branch
                  %672 = sbr.rel target = $region102
                $region107: #{block_forward.1} parent=99 // loop_exit
                  _
                loop: start=0, step=1, limit=1
                $region108: #{block_forward.1} parent=99 // loop_pre_header
                  _
                $region109: #{block_forward.1} parent=99 // loop_header
                  %s682 = sphi 0, %s686
                  %p683 = scmp.ge.s32.totalorder %s682, 1
                  %s687 = sphi %s615, %s615
                  %s688 = sphi %s622, %s622
                $region110: #{block_forward.1} parent=99 // loop_header_branch
                  %685 = sbr.rel (%p683) target = $region114
                $region111: #{block_forward.1} parent=99 // loop_body
                  %v689 = vld [vmem:[%s687] sm:$0xf]
                  %690 = vst [vmem:[%s688] sm:$0xf] %v689
                  %v691 = vld [vmem:[%s687 + $0x4] sm:$0xf]
                  %692 = vst [vmem:[%s688 + $0x8] sm:$0xf] %v691
                  %v693 = vld [vmem:[%s687 + $0x8] sm:$0xf]
                  %694 = vst [vmem:[%s688 + $0x10] sm:$0xf] %v693
                  %v695 = vld [vmem:[%s687 + $0xc] sm:$0xf]
                  %696 = vst [vmem:[%s688 + $0x18] sm:$0xf] %v695
                  %v697 = vld [vmem:[%s687 + $0x10] sm:$0xf]
                  %698 = vst [vmem:[%s688 + $0x20] sm:$0xf] %v697
                  %v699 = vld [vmem:[%s687 + $0x14] sm:$0xf]
                  %700 = vst [vmem:[%s688 + $0x28] sm:$0xf] %v699
                  %v701 = vld [vmem:[%s687 + $0x18] sm:$0xf]
                  %702 = vst [vmem:[%s688 + $0x30] sm:$0xf] %v701
                  %v703 = vld [vmem:[%s687 + $0x1c] sm:$0xf]
                  %704 = vst [vmem:[%s688 + $0x38] sm:$0xf] %v703
                  %v705 = vld [vmem:[%s687 + $0x20] sm:$0xf]
                  %706 = vst [vmem:[%s688 + $0x40] sm:$0xf] %v705
                  %v707 = vld [vmem:[%s687 + $0x24] sm:$0xf]
                  %708 = vst [vmem:[%s688 + $0x48] sm:$0xf] %v707
                  %v709 = vld [vmem:[%s687 + $0x28] sm:$0xf]
                  %710 = vst [vmem:[%s688 + $0x50] sm:$0xf] %v709
                  %v711 = vld [vmem:[%s687 + $0x2c] sm:$0xf]
                  %712 = vst [vmem:[%s688 + $0x58] sm:$0xf] %v711
                  %v713 = vld [vmem:[%s687 + $0x30] sm:$0xf]
                  %714 = vst [vmem:[%s688 + $0x60] sm:$0xf] %v713
                  %v715 = vld [vmem:[%s687 + $0x34] sm:$0xf]
                  %716 = vst [vmem:[%s688 + $0x68] sm:$0xf] %v715
                  %v717 = vld [vmem:[%s687 + $0x38] sm:$0xf]
                  %718 = vst [vmem:[%s688 + $0x70] sm:$0xf] %v717
                  %v719 = vld [vmem:[%s687 + $0x3c] sm:$0xf]
                  %720 = vst [vmem:[%s688 + $0x78] sm:$0xf] %v719
                $region112: #{block_forward.1} parent=99 // loop_footer
                  %s686 = sadd.s32 1, %s682
                $region113: #{block_forward.1} parent=99 // loop_footer_branch
                  %681 = sbr.rel target = $region109
                $region114: #{block_forward.1} parent=99 // loop_exit
                  _
              $region100: #{block_forward.1} parent=84 // pred_fallthru
                _
            $region85: #{block_forward.1} parent=80 // pred_fallthru
              _
            // Predicated region
            $region86: #{block_forward.1} parent=80 // pred_check
              _
            $region87: #{block_forward.1} parent=80 // pred_check_branch
              %628 = sbr.rel (0) target = $region89
            $region88: #{block_forward.1} parent=80 // pred_region
              loop: start=0, step=1, limit=1
              $region90: #{block_forward.1} parent=88 // loop_pre_header
                _
              $region91: #{block_forward.1} parent=88 // loop_header
                %s631 = sphi 0, %s635
                %p632 = scmp.ge.s32.totalorder %s631, 1
                %s636 = sphi %s615, %s615
                %s637 = sphi %s622, %s622
              $region92: #{block_forward.1} parent=88 // loop_header_branch
                %634 = sbr.rel (%p632) target = $region96
              $region93: #{block_forward.1} parent=88 // loop_body
                %v638 = vld [vmem:[%s636] sm:$0xf]
                %639 = vst [vmem:[%s637] sm:$0xf] %v638
                %v640 = vld [vmem:[%s636 + $0x4] sm:$0xf]
                %641 = vst [vmem:[%s637 + $0x8] sm:$0xf] %v640
                %v642 = vld [vmem:[%s636 + $0x8] sm:$0xf]
                %643 = vst [vmem:[%s637 + $0x10] sm:$0xf] %v642
                %v644 = vld [vmem:[%s636 + $0xc] sm:$0xf]
                %645 = vst [vmem:[%s637 + $0x18] sm:$0xf] %v644
                %v646 = vld [vmem:[%s636 + $0x10] sm:$0xf]
                %647 = vst [vmem:[%s637 + $0x20] sm:$0xf] %v646
                %v648 = vld [vmem:[%s636 + $0x14] sm:$0xf]
                %649 = vst [vmem:[%s637 + $0x28] sm:$0xf] %v648
                %v650 = vld [vmem:[%s636 + $0x18] sm:$0xf]
                %651 = vst [vmem:[%s637 + $0x30] sm:$0xf] %v650
                %v652 = vld [vmem:[%s636 + $0x1c] sm:$0xf]
                %653 = vst [vmem:[%s637 + $0x38] sm:$0xf] %v652
                %v654 = vld [vmem:[%s636 + $0x20] sm:$0xf]
                %655 = vst [vmem:[%s637 + $0x40] sm:$0xf] %v654
                %v656 = vld [vmem:[%s636 + $0x24] sm:$0xf]
                %657 = vst [vmem:[%s637 + $0x48] sm:$0xf] %v656
                %v658 = vld [vmem:[%s636 + $0x28] sm:$0xf]
                %659 = vst [vmem:[%s637 + $0x50] sm:$0xf] %v658
                %v660 = vld [vmem:[%s636 + $0x2c] sm:$0xf]
                %661 = vst [vmem:[%s637 + $0x58] sm:$0xf] %v660
                %v662 = vld [vmem:[%s636 + $0x30] sm:$0xf]
                %663 = vst [vmem:[%s637 + $0x60] sm:$0xf] %v662
                %v664 = vld [vmem:[%s636 + $0x34] sm:$0xf]
                %665 = vst [vmem:[%s637 + $0x68] sm:$0xf] %v664
                %v666 = vld [vmem:[%s636 + $0x38] sm:$0xf]
                %667 = vst [vmem:[%s637 + $0x70] sm:$0xf] %v666
                %v668 = vld [vmem:[%s636 + $0x3c] sm:$0xf]
                %669 = vst [vmem:[%s637 + $0x78] sm:$0xf] %v668
              $region94: #{block_forward.1} parent=88 // loop_footer
                %s635 = sadd.s32 1, %s631
              $region95: #{block_forward.1} parent=88 // loop_footer_branch
                %630 = sbr.rel target = $region91
              $region96: #{block_forward.1} parent=88 // loop_exit
                _
            $region89: #{block_forward.1} parent=80 // pred_fallthru
              _
          $region81: #{block_forward.1} parent=76 // pred_fallthru
            _
          %721 = vnop
        $region77: #{block_forward.1} parent=68 // pred_fallthru
          _
      $region69: #{block_forward.1} parent=5 // pred_fallthru
        _
      %p722 = scmp.le.s32.totalorder 2, %s9
      // Predicated region
      $region115: #{block_forward.1} parent=5 // pred_check
        %p723 = pneg %p722
      $region116: #{block_forward.1} parent=5 // pred_check_branch
        %725 = sbr.rel (%p723) target = $region118
      $region117: #{block_forward.1} parent=5 // pred_region
        %s726 = ssub.s32 %s9, 2
        // Predicated region
        $region119: #{block_forward.1} parent=117 // pred_check
          %p727 = pneg %p122
        $region120: #{block_forward.1} parent=117 // pred_check_branch
          %729 = sbr.rel (%p727) target = $region122
        $region121: #{block_forward.1} parent=117 // pred_region
          %s730 = sand.u32 %s107, 1
          %s731 = sand.u32 %s107, 1
          %s732 = smul.addr %s731, 64
          %s733 = scalar_lea.vmem [#allocation3], %s732
        $region122: #{block_forward.1} parent=117 // pred_fallthru
          _
      $region118: #{block_forward.1} parent=5 // pred_fallthru
        _
    $region6: #{block_forward.1} parent=1 // loop_footer
      %s13 = sadd.s32 1, %s9
    $region7: #{block_forward.1} parent=1 // loop_footer_branch
      %8 = sbr.rel target = $region3
    $region8: #{block_forward.1} parent=1 // loop_exit
      _

</llo_original>
